<compile_context>
chip_gen: v7x
topology: tpu7x:2x2x1
jax: 0.10.0
libtpu: 0.0.40
codegen_flags: <defaults>
</compile_context>

<pallas_src>
import jax
import jax.numpy as jnp
from jax.experimental import pallas as pl
from jax.experimental.pallas import tpu as pltpu


_TARGET_BLOCK_BYTES = 8 << 20   # ~8 MiB of x per grid step
_VMEM_LIMIT_BYTES = 48 << 20    # double-buffered (x + out) blocks + headroom
_MIN_GRID_STEPS = 4             # >= 2 steps per TensorCore on v7x megacore


def _element_scale_kernel(x_ref, s_ref, o_ref):
    # x_ref: (tr, tc) tile of x; s_ref: (tr, 1) or (1, tc) scale tile.
    # Single VPU broadcast multiply; mem-bound, no scratch/accumulators.
    o_ref[...] = x_ref[...] * s_ref[...]


def _sublane_pack(dtype) -> int:
    """Rows per packed sublane tile: 8 for 4-byte, 16 for 2-byte, 32 for 1-byte."""
    itemsize = jnp.dtype(dtype).itemsize
    return 8 * max(1, 4 // itemsize)


def _pick_tile(extent: int, bytes_per_unit: int, granule: int,
               target_bytes: int = _TARGET_BLOCK_BYTES,
               min_steps: int = _MIN_GRID_STEPS) -> int:
    """Tile length along the tiled dimension.

    Returns a multiple of `granule` (or the full `extent`, which is always a
    legal block dim), capped so one x block stays around `target_bytes`, and
    preferring at least `min_steps` grid steps when the extent is large
    enough to split. Used with grid = cdiv(extent, tile); Pallas handles the
    partial tail block.
    """
    if extent <= granule:
        return extent
    # Cap from the VMEM byte budget (at least one granule).
    cap = max(granule,
              (target_bytes // max(1, bytes_per_unit)) // granule * granule)
    # Cap from the min-grid-steps preference, only when splittable.
    if extent >= min_steps * granule:
        steps_cap = max(granule, (extent // min_steps) // granule * granule)
        cap = min(cap, steps_cap)
    if cap >= extent:
        return extent  # single full-extent block (always legal)
    return cap


def element_scale(x: jax.Array, scale: jax.Array, *,
                  donate_x: bool = False) -> jax.Array:
    """x: (N, C, H, W); scale: (1, C, 1, 1). Returns x * scale (NCHW)."""
    n, c, h, w = x.shape
    assert scale.shape == (1, c, 1, 1)
    scale = scale.astype(x.dtype)
    hw = h * w
    itemsize = jnp.dtype(x.dtype).itemsize

    if hw % 128 == 0:
        # "rows" layout: (N*C, H*W); per-row scale; tile along rows.
        rows, cols = n * c, hw
        x2d = x.reshape(rows, cols)
        scale2d = jnp.broadcast_to(
            scale.reshape(1, c, 1), (n, c, 1)).reshape(rows, 1)
        tr = _pick_tile(rows, cols * itemsize, _sublane_pack(x.dtype))
        grid = (pl.cdiv(rows, tr),)
        x_spec = pl.BlockSpec((tr, cols), lambda i: (i, 0))
        s_spec = pl.BlockSpec((tr, 1), lambda i: (i, 0))
        o_spec = pl.BlockSpec((tr, cols), lambda i: (i, 0))
    else:
        # "cols" layout: (N, C*H*W); per-column scale; tile along lanes.
        rows, cols = n, c * hw
        x2d = x.reshape(rows, cols)
        scale2d = jnp.broadcast_to(
            scale.reshape(1, c, 1), (1, c, hw)).reshape(1, cols)
        tc = _pick_tile(cols, rows * itemsize, 128)
        grid = (pl.cdiv(cols, tc),)
        x_spec = pl.BlockSpec((rows, tc), lambda j: (0, j))
        s_spec = pl.BlockSpec((1, tc), lambda j: (0, j))
        o_spec = pl.BlockSpec((rows, tc), lambda j: (0, j))

    out2d = pl.pallas_call(
        _element_scale_kernel,
        out_shape=jax.ShapeDtypeStruct((rows, cols), x.dtype),
        grid_spec=pltpu.PrefetchScalarGridSpec(
            num_scalar_prefetch=0,
            grid=grid,
            in_specs=[x_spec, s_spec],
            out_specs=o_spec,
        ),
        compiler_params=pltpu.CompilerParams(
            dimension_semantics=("parallel",),
            vmem_limit_bytes=_VMEM_LIMIT_BYTES,
        ),
        input_output_aliases=({0: 0} if donate_x else {}),
    )(x2d, scale2d)

    return out2d.reshape(n, c, h, w)


class ElementScale:
    """JAX/Pallas port of the learnable element-wise scaler."""

    def __init__(self, embed_dims: int, init_value: float = 0.0):
        # Matches nn.Parameter(init_value * ones((1, C, 1, 1))).
        self.scale = init_value * jnp.ones((1, embed_dims, 1, 1),
                                           dtype=jnp.float32)

    def __call__(self, x: jax.Array) -> jax.Array:
        return element_scale(x, self.scale)


if __name__ == "__main__":
    key = jax.random.PRNGKey(0)

    # Case 1: lane-friendly spatial (H*W = 256) -> "rows" layout.
    N, C, H, W = 2, 4, 16, 16
    x1 = jax.random.normal(key, (N, C, H, W), dtype=jnp.float32)
    # Nonzero init so the scaling is observable (PyTorch default 0.0 zeroes out).
    mod1 = ElementScale(embed_dims=C, init_value=0.02)
    out1 = jax.block_until_ready(mod1(x1))
    ref1 = x1 * mod1.scale.astype(x1.dtype)
    assert out1.shape == (N, C, H, W)
    assert jnp.allclose(out1, ref1, atol=1e-6, rtol=1e-6)

    # Case 2: lane-unfriendly spatial (H*W = 49, MogaNet last stage) -> "cols" layout.
    N2, C2, H2, W2 = 2, 4, 7, 7
    x2 = jax.random.normal(jax.random.PRNGKey(1), (N2, C2, H2, W2),
                           dtype=jnp.float32)
    mod2 = ElementScale(embed_dims=C2, init_value=0.5)
    out2 = jax.block_until_ready(mod2(x2))
    ref2 = x2 * mod2.scale.astype(x2.dtype)
    assert out2.shape == (N2, C2, H2, W2)
    assert jnp.allclose(out2, ref2, atol=1e-6, rtol=1e-6)

    print("KERNEL_OK")
</pallas_src>

<mosaic_0001>
module attributes {stable_mosaic.version = 11 : i64} {
  func.func @_element_scale_kernel(%arg0: i32, %arg1: memref<8x256xf32, #tpu.memory_space<vmem>>, %arg2: memref<8x1xf32, #tpu.memory_space<vmem>>, %arg3: memref<8x256xf32, #tpu.memory_space<vmem>>) attributes {dimension_semantics = [#tpu.dimension_semantics<parallel>], iteration_bounds = array<i64: 1>, scalar_prefetch = 0 : i64, scratch_operands = 0 : i64, tpu.core_type = #tpu.core_type<tc>, window_params = [{transform_indices = @transform_0, window_bounds = array<i64: 8, 256>}, {transform_indices = @transform_1, window_bounds = array<i64: 8, 1>}, {transform_indices = @transform_2, window_bounds = array<i64: 8, 256>}]} {
    %c0 = arith.constant 0 : index
    %c0_0 = arith.constant 0 : index
    %0 = vector.load %arg1[%c0, %c0_0] : memref<8x256xf32, #tpu.memory_space<vmem>>, vector<8x256xf32>
    %c0_1 = arith.constant 0 : index
    %c0_2 = arith.constant 0 : index
    %1 = vector.load %arg2[%c0_1, %c0_2] : memref<8x1xf32, #tpu.memory_space<vmem>>, vector<8x1xf32>
    %2 = vector.broadcast %1 : vector<8x1xf32> to vector<8x256xf32>
    %3 = arith.mulf %0, %2 : vector<8x256xf32>
    %c0_3 = arith.constant 0 : index
    %c0_4 = arith.constant 0 : index
    %4 = vector.load %arg3[%c0_3, %c0_4] : memref<8x256xf32, #tpu.memory_space<vmem>>, vector<8x256xf32>
    tpu.vector_store %arg3[%c0_3, %c0_4], %3 {strides = array<i32>} : memref<8x256xf32, #tpu.memory_space<vmem>>, vector<8x256xf32>,
    return
  }
  func.func @transform_0(%arg0: i32) -> (i32, i32) {
    %c0_i32 = arith.constant 0 : i32
    %c0_i32_0 = arith.constant 0 : i32
    return %arg0, %c0_i32 : i32, i32
  }
  func.func @transform_1(%arg0: i32) -> (i32, i32) {
    %c0_i32 = arith.constant 0 : i32
    %c0_i32_0 = arith.constant 0 : i32
    return %arg0, %c0_i32 : i32, i32
  }
  func.func @transform_2(%arg0: i32) -> (i32, i32) {
    %c0_i32 = arith.constant 0 : i32
    %c0_i32_0 = arith.constant 0 : i32
    return %arg0, %c0_i32 : i32, i32
  }
}

</mosaic_0001>

<llo_original>
// kernel: tpu_custom_call.1
$region0: #{tpu_custom_call.1}
  #allocation0 [shape = 'u32[]', space=smem, size = 0x4, offset = 0x4, fixed_abs, tag = 'smem constant byte address 0x4 - core index']
  #allocation1 [shape = 'u32[144,128]{1,0:T(1,128)}', space=vmem, size = 0x12000, scoped, tag = 'internal scratch']
  %s0 = inlined_call_operand.hbm [shape: f32[8,256], index: 0, kind: input, shape index: {}]
  %s1 = inlined_call_operand.vmem [shape: f32[8,1], index: 1, kind: input, shape index: {}]
  %s2 = inlined_call_operand.hbm [shape: f32[8,256], index: 2, kind: output, shape index: {}]
  %s3 = sld [smem:[#allocation0]]
  $region22: #{tpu_custom_call.1} parent=0
    _
  %s5 = ssub.s32 1, %s3
  %s6 = scalar_select 0, %s5, %s3
  $region1: #{tpu_custom_call.1} parent=0
    #allocation2 [shape = 'u8[8192]{0}', space=vmem, size = 0x2000, scoped, tag = 'input window, operand 0, single buffered']
    #allocation3 [shape = 's32[1]{0}', space=sflag, size = 0x4, scoped, tag = 'scoped memory for tpu_custom_call.1']
    #allocation4 [shape = 's32[1]{0}', space=sflag, size = 0x4, scoped, tag = 'scoped memory for tpu_custom_call.1']
    #allocation5 [shape = 'u8[8192]{0}', space=vmem, size = 0x2000, scoped, tag = 'output window, operand 0, single buffered']
    %7 = vsyncpa [#allocation3], 0
    %8 = vsyncpa [#allocation4], 0
    // Predicated region
    $region2: #{tpu_custom_call.1} parent=1 // pred_check
      _
    $region3: #{tpu_custom_call.1} parent=1 // pred_check_branch
      %10 = sbr.rel (0) target = $region5
    $region4: #{tpu_custom_call.1} parent=1 // pred_region
      %s12 = ssub.s32 256, 256
      %13 = vsyncadd [#allocation3], %s12
      %s15 = sshll.u32 [#allocation2], 4
      %s16 = int_to_ptr.vmem [resolvable:$true] %s15
      %18 = dma.hbm_to_vmem [thread:$0]  %s0, 256, %s16, [#allocation3]
    $region5: #{tpu_custom_call.1} parent=1 // pred_fallthru
      _
    // Predicated region
    $region6: #{tpu_custom_call.1} parent=1 // pred_check
      _
    $region7: #{tpu_custom_call.1} parent=1 // pred_check_branch
      %20 = sbr.rel (0) target = $region9
    $region8: #{tpu_custom_call.1} parent=1 // pred_region
      _
    $region9: #{tpu_custom_call.1} parent=1 // pred_fallthru
      _
    // Predicated region
    $region10: #{tpu_custom_call.1} parent=1 // pred_check
      _
    $region11: #{tpu_custom_call.1} parent=1 // pred_check_branch
      %22 = sbr.rel (0) target = $region13
    $region12: #{tpu_custom_call.1} parent=1 // pred_region
      %23 = dma.done [#allocation3], 256
    $region13: #{tpu_custom_call.1} parent=1 // pred_fallthru
      _
    %v24 = vld [vmem:[#allocation2] sm:$0xff]
    %v25 = vld [vmem:[#allocation2 + $0x8] sm:$0xff]
    %v26 = vld [vmem:[%s1] sm:$0xff]
    %28 = vset.pattern.permute.xlu0 0
    %29 = vperm.xlu0 %28, %v26
    %v30 = vpop.permute.xlu0 %29
    %v32 = vmul.f32 %v24, %v30
    %v33 = vmul.f32 %v25, %v30
    %34 = vst [vmem:[#allocation5] sm:$0xff] %v32
    %35 = vst [vmem:[#allocation5 + $0x8] sm:$0xff] %v33
    // Predicated region
    $region14: #{tpu_custom_call.1} parent=1 // pred_check
      _
    $region15: #{tpu_custom_call.1} parent=1 // pred_check_branch
      %37 = sbr.rel (0) target = $region17
    $region16: #{tpu_custom_call.1} parent=1 // pred_region
      %s39 = ssub.s32 256, 256
      %40 = vsyncadd [#allocation4], %s39
      %s42 = sshll.u32 [#allocation5], 4
      %s43 = int_to_ptr.vmem [resolvable:$true] %s42
      %45 = dma.vmem_to_hbm [thread:$0]  %s43, 256, %s2, [#allocation4]
    $region17: #{tpu_custom_call.1} parent=1 // pred_fallthru
      _
    // Predicated region
    $region18: #{tpu_custom_call.1} parent=1 // pred_check
      _
    $region19: #{tpu_custom_call.1} parent=1 // pred_check_branch
      %47 = sbr.rel (0) target = $region21
    $region20: #{tpu_custom_call.1} parent=1 // pred_region
      %48 = dma.done [#allocation4], 256
    $region21: #{tpu_custom_call.1} parent=1 // pred_fallthru
      _
    %49 = vsyncpa [#allocation3], 1
    %50 = vsyncpa [#allocation4], 1

</llo_original>
